<compile_context>
chip_gen: v5e
topology: v5e:2x2
jax: 0.10.0
libtpu: 0.0.40
codegen_flags: <defaults>
</compile_context>

<pallas_src>
import jax
import jax.numpy as jnp
from jax.experimental import pallas as pl
from jax.experimental.pallas import tpu as pltpu

EPS = 1e-5          # BatchNorm1d default eps
NEG_BIG = -1e30     # stands in for the -inf padding of MaxPool1d


def _circular_taps(x):
    """x: (L, C) -> (L, 3C) = [x[l-1] | x[l] | x[l+1]] (circular in l)."""
    L = x.shape[0]
    xm1 = jnp.concatenate([x[L - 1:L, :], x[:L - 1, :]], axis=0)   # x[(l-1)%L]
    xp1 = jnp.concatenate([x[1:L, :], x[0:1, :]], axis=0)          # x[(l+1)%L]
    return jnp.concatenate([xm1, x, xp1], axis=-1)                 # (L, 3C)


# ---------------------------------------------------------------------------
# Pass A: fused 3-tap circular conv (single matmul) + per-batch partial
# BatchNorm statistics.  Batch axis is "parallel" (no cross-step accumulation);
# the B partials are reduced by tiny XLA glue in the wrapper.
# ---------------------------------------------------------------------------
def _conv_stats_kernel(x_ref, w_ref, psum_ref, psumsq_ref):
    x = x_ref[0]                                            # (L, C)
    xs = _circular_taps(x)                                  # (L, 3C)
    y = jnp.dot(xs, w_ref[...], preferred_element_type=jnp.float32)  # (L, C)
    psum_ref[0] = jnp.sum(y, axis=0, keepdims=True)         # (1, C)
    psumsq_ref[0] = jnp.sum(y * y, axis=0, keepdims=True)   # (1, C)


# ---------------------------------------------------------------------------
# Pass B: recompute conv (avoids the HBM round trip of y), apply folded BN
# affine, ELU, and MaxPool1d(k=3, s=2, pad=1) via stride-2 sublane reads of a
# padded VMEM scratch.
# ---------------------------------------------------------------------------
def _conv_norm_pool_kernel(x_ref, w_ref, scale_ref, shift_ref, out_ref, pad_ref):
    x = x_ref[0]                                            # (L, C)
    L = x.shape[0]
    L_out = out_ref.shape[1]

    xs = _circular_taps(x)                                  # (L, 3C)
    y = jnp.dot(xs, w_ref[...], preferred_element_type=jnp.float32)  # (L, C)

    z = y * scale_ref[...] + shift_ref[...]                 # folded BN affine
    a = jnp.where(z > 0, z, jnp.expm1(z))                   # ELU(alpha=1)

    # MaxPool along L: out[j] = max(a[2j-1], a[2j], a[2j+1]) with -inf pads.
    pad_ref[...] = jnp.full(pad_ref.shape, NEG_BIG, dtype=pad_ref.dtype)
    pad_ref[pl.ds(1, L), :] = a                             # rows 1..L hold a
    s0 = pad_ref[pl.ds(0, L_out, stride=2), :]              # a[2j-1]
    s1 = pad_ref[pl.ds(1, L_out, stride=2), :]              # a[2j]
    s2 = pad_ref[pl.ds(2, L_out, stride=2), :]              # a[2j+1]
    out_ref[0] = jnp.maximum(jnp.maximum(s0, s1), s2)       # (L_out, C)


# ---------------------------------------------------------------------------
# Wrapper
# ---------------------------------------------------------------------------
def distilling_layer(x, conv_w, conv_b, gamma, beta):
    """x: (B, L, C); conv_w: (C, C, 3); conv_b, gamma, beta: (C,).

    conv_b is accepted for interface parity but is mathematically absorbed by
    the training-mode BatchNorm that follows (per-channel constant shifts the
    batch mean, leaves the variance and the normalized output unchanged).
    """
    del conv_b
    B, L, C = x.shape
    L_out = (L - 1) // 2 + 1

    x = x.astype(jnp.float32)
    # Fused tap weight: row (k*C + i), col o  ==  conv_w[o, i, k]  -> (3C, C)
    w_cat = jnp.transpose(conv_w.astype(jnp.float32), (2, 1, 0)).reshape(3 * C, C)

    # ---- pass A: per-batch partial statistics (parallel over batch) --------
    psum, psumsq = pl.pallas_call(
        _conv_stats_kernel,
        out_shape=(jax.ShapeDtypeStruct((B, 1, C), jnp.float32),
                   jax.ShapeDtypeStruct((B, 1, C), jnp.float32)),
        grid_spec=pltpu.PrefetchScalarGridSpec(
            num_scalar_prefetch=0, grid=(B,),
            in_specs=[pl.BlockSpec((1, L, C), lambda b: (b, 0, 0)),
                      pl.BlockSpec((3 * C, C), lambda b: (0, 0))],
            out_specs=(pl.BlockSpec((1, 1, C), lambda b: (b, 0, 0)),
                       pl.BlockSpec((1, 1, C), lambda b: (b, 0, 0)))),
        compiler_params=pltpu.CompilerParams(
            dimension_semantics=("parallel",)),
    )(x, w_cat)

    # ---- tiny scalar glue: finish BN stats, pre-fold the affine ------------
    n = float(B * L)
    mean = jnp.sum(psum, axis=(0, 1)) / n                    # (C,)
    var = jnp.sum(psumsq, axis=(0, 1)) / n - mean * mean     # biased (training)
    scale = gamma.astype(jnp.float32) * jax.lax.rsqrt(var + EPS)
    shift = beta.astype(jnp.float32) - mean * scale

    # ---- pass B: conv + norm + ELU + maxpool, output directly (B,L_out,C) --
    out = pl.pallas_call(
        _conv_norm_pool_kernel,
        out_shape=jax.ShapeDtypeStruct((B, L_out, C), jnp.float32),
        grid_spec=pltpu.PrefetchScalarGridSpec(
            num_scalar_prefetch=0, grid=(B,),
            in_specs=[pl.BlockSpec((1, L, C), lambda b: (b, 0, 0)),
                      pl.BlockSpec((3 * C, C), lambda b: (0, 0)),
                      pl.BlockSpec((1, C), lambda b: (0, 0)),
                      pl.BlockSpec((1, C), lambda b: (0, 0))],
            out_specs=pl.BlockSpec((1, L_out, C), lambda b: (b, 0, 0)),
            scratch_shapes=[pltpu.VMEM((L + 2, C), jnp.float32)]),
        compiler_params=pltpu.CompilerParams(
            dimension_semantics=("parallel",)),
    )(x, w_cat, scale.reshape(1, C), shift.reshape(1, C))

    return out                                               # (B, L_out, C)


# ---------------------------------------------------------------------------
# Pure-JAX reference (mirrors the PyTorch forward semantics, bias included)
# ---------------------------------------------------------------------------
def reference(x, conv_w, conv_b, gamma, beta):
    xt = jnp.transpose(x, (0, 2, 1))                          # (B, C, L)
    L = xt.shape[-1]
    xp = jnp.concatenate([xt[..., L - 1:L], xt, xt[..., 0:1]], axis=-1)
    y = sum(jnp.einsum('oi,bil->bol', conv_w[:, :, k], xp[:, :, k:k + L])
            for k in range(3)) + conv_b[None, :, None]
    mean = y.mean(axis=(0, 2))
    var = y.var(axis=(0, 2))                                  # biased
    z = (y - mean[None, :, None]) / jnp.sqrt(var[None, :, None] + EPS)
    z = z * gamma[None, :, None] + beta[None, :, None]
    a = jnp.where(z > 0, z, jnp.expm1(z))
    L_out = (L - 1) // 2 + 1
    ap = jnp.pad(a, ((0, 0), (0, 0), (1, 1)), constant_values=-jnp.inf)
    cols = [ap[:, :, 2 * j: 2 * j + 3].max(axis=-1) for j in range(L_out)]
    out = jnp.stack(cols, axis=-1)
    return jnp.transpose(out, (0, 2, 1))


if __name__ == "__main__":
    B, L, C = 2, 8, 32     # batch=2, seq=8, channel=32

    key = jax.random.PRNGKey(0)
    kx, kw, kb, kg, kbeta = jax.random.split(key, 5)
    x = jax.random.normal(kx, (B, L, C), dtype=jnp.float32)
    conv_w = 0.2 * jax.random.normal(kw, (C, C, 3), dtype=jnp.float32)
    conv_b = 0.1 * jax.random.normal(kb, (C,), dtype=jnp.float32)
    gamma = 1.0 + 0.1 * jax.random.normal(kg, (C,), dtype=jnp.float32)
    beta = 0.1 * jax.random.normal(kbeta, (C,), dtype=jnp.float32)

    out = distilling_layer(x, conv_w, conv_b, gamma, beta)
    out = jax.block_until_ready(out)

    ref = reference(x, conv_w, conv_b, gamma, beta)
    assert out.shape == (B, (L - 1) // 2 + 1, C), out.shape
    assert jnp.allclose(out, ref, atol=1e-4, rtol=1e-4), \
        float(jnp.max(jnp.abs(out - ref)))

    print("KERNEL_OK")
</pallas_src>

<mosaic_0001>
module attributes {stable_mosaic.version = 11 : i64} {
  func.func @_conv_stats_kernel(%arg0: i32, %arg1: memref<1x8x32xf32, #tpu.memory_space<vmem>>, %arg2: memref<96x32xf32, #tpu.memory_space<vmem>>, %arg3: memref<1x1x32xf32, #tpu.memory_space<vmem>>, %arg4: memref<1x1x32xf32, #tpu.memory_space<vmem>>) attributes {dimension_semantics = [#tpu.dimension_semantics<parallel>], iteration_bounds = array<i64: 2>, scalar_prefetch = 0 : i64, scratch_operands = 0 : i64, tpu.core_type = #tpu.core_type<tc>, window_params = [{transform_indices = @transform_0, window_bounds = array<i64: 1, 8, 32>}, {pipeline_mode = #tpu.pipeline_mode<synchronous>, transform_indices = @transform_1, window_bounds = array<i64: 96, 32>}, {transform_indices = @transform_2, window_bounds = array<i64: 1, 1, 32>}, {transform_indices = @transform_3, window_bounds = array<i64: 1, 1, 32>}]} {
    %c0 = arith.constant 0 : index
    %c0_0 = arith.constant 0 : index
    %c0_1 = arith.constant 0 : index
    %0 = vector.load %arg1[%c0, %c0_0, %c0_1] : memref<1x8x32xf32, #tpu.memory_space<vmem>>, vector<1x8x32xf32>
    %1 = vector.shape_cast %0 : vector<1x8x32xf32> to vector<8x32xf32>
    %2 = vector.extract_strided_slice %1 {offsets = [7, 0], sizes = [1, 32], strides = [1, 1]} : vector<8x32xf32> to vector<1x32xf32>
    %3 = vector.extract_strided_slice %1 {offsets = [0, 0], sizes = [7, 32], strides = [1, 1]} : vector<8x32xf32> to vector<7x32xf32>
    %4 = tpu.concatenate %2, %3 in 0 : vector<1x32xf32>, vector<7x32xf32> -> vector<8x32xf32>
    %5 = vector.extract_strided_slice %1 {offsets = [1, 0], sizes = [7, 32], strides = [1, 1]} : vector<8x32xf32> to vector<7x32xf32>
    %6 = vector.extract_strided_slice %1 {offsets = [0, 0], sizes = [1, 32], strides = [1, 1]} : vector<8x32xf32> to vector<1x32xf32>
    %7 = tpu.concatenate %5, %6 in 0 : vector<7x32xf32>, vector<1x32xf32> -> vector<8x32xf32>
    %8 = tpu.concatenate %4, %1, %7 in 1 : vector<8x32xf32>, vector<8x32xf32>, vector<8x32xf32> -> vector<8x96xf32>
    %c0_2 = arith.constant 0 : index
    %c0_3 = arith.constant 0 : index
    %9 = vector.load %arg2[%c0_2, %c0_3] : memref<96x32xf32, #tpu.memory_space<vmem>>, vector<96x32xf32>
    %cst = arith.constant dense<0.000000e+00> : vector<8x32xf32>
    %10 = tpu.matmul %8, %9, %cst {dimension_numbers = #tpu.dot_dimension_numbers<[1], [0], [0], [1], [0, 0, 1, 1], [], []>} : vector<8x96xf32>, vector<96x32xf32>, vector<8x32xf32> -> vector<8x32xf32>
    %cst_4 = arith.constant dense<0.000000e+00> : vector<32xf32>
    %11 = vector.multi_reduction <add>, %10, %cst_4 [0] : vector<8x32xf32> to vector<32xf32>
    %12 = vector.shape_cast %11 : vector<32xf32> to vector<1x32xf32>
    %c0_5 = arith.constant 0 : index
    %c0_6 = arith.constant 0 : index
    %c0_7 = arith.constant 0 : index
    %13 = vector.load %arg3[%c0_5, %c0_6, %c0_7] : memref<1x1x32xf32, #tpu.memory_space<vmem>>, vector<1x1x32xf32>
    %14 = vector.shape_cast %13 : vector<1x1x32xf32> to vector<1x32xf32>
    %15 = vector.shape_cast %12 : vector<1x32xf32> to vector<1x1x32xf32>
    tpu.vector_store %arg3[%c0_5, %c0_6, %c0_7], %15 {strides = array<i32>} : memref<1x1x32xf32, #tpu.memory_space<vmem>>, vector<1x1x32xf32>,
    %16 = arith.mulf %10, %10 : vector<8x32xf32>
    %cst_8 = arith.constant dense<0.000000e+00> : vector<32xf32>
    %17 = vector.multi_reduction <add>, %16, %cst_8 [0] : vector<8x32xf32> to vector<32xf32>
    %18 = vector.shape_cast %17 : vector<32xf32> to vector<1x32xf32>
    %c0_9 = arith.constant 0 : index
    %c0_10 = arith.constant 0 : index
    %c0_11 = arith.constant 0 : index
    %19 = vector.load %arg4[%c0_9, %c0_10, %c0_11] : memref<1x1x32xf32, #tpu.memory_space<vmem>>, vector<1x1x32xf32>
    %20 = vector.shape_cast %19 : vector<1x1x32xf32> to vector<1x32xf32>
    %21 = vector.shape_cast %18 : vector<1x32xf32> to vector<1x1x32xf32>
    tpu.vector_store %arg4[%c0_9, %c0_10, %c0_11], %21 {strides = array<i32>} : memref<1x1x32xf32, #tpu.memory_space<vmem>>, vector<1x1x32xf32>,
    return
  }
  func.func @transform_0(%arg0: i32) -> (i32, i32, i32) {
    %c0_i32 = arith.constant 0 : i32
    %c0_i32_0 = arith.constant 0 : i32
    %c0_i32_1 = arith.constant 0 : i32
    return %arg0, %c0_i32, %c0_i32_0 : i32, i32, i32
  }
  func.func @transform_1(%arg0: i32) -> (i32, i32) {
    %c0_i32 = arith.constant 0 : i32
    %c0_i32_0 = arith.constant 0 : i32
    %c0_i32_1 = arith.constant 0 : i32
    return %c0_i32, %c0_i32_0 : i32, i32
  }
  func.func @transform_2(%arg0: i32) -> (i32, i32, i32) {
    %c0_i32 = arith.constant 0 : i32
    %c0_i32_0 = arith.constant 0 : i32
    %c0_i32_1 = arith.constant 0 : i32
    return %arg0, %c0_i32, %c0_i32_0 : i32, i32, i32
  }
  func.func @transform_3(%arg0: i32) -> (i32, i32, i32) {
    %c0_i32 = arith.constant 0 : i32
    %c0_i32_0 = arith.constant 0 : i32
    %c0_i32_1 = arith.constant 0 : i32
    return %arg0, %c0_i32, %c0_i32_0 : i32, i32, i32
  }
}

</mosaic_0001>

<llo_original>
// kernel: tpu_custom_call.1
$region0: #{tpu_custom_call.1}
  #allocation0 [shape = 'u32[]', space=smem, size = 0x4, offset = 0x4, fixed_abs, tag = 'smem constant byte address 0x4 - core index']
  #allocation1 [shape = 'u32[72,128]{1,0:T(1,128)}', space=vmem, size = 0x9000, scoped, tag = 'internal scratch']
  %s0 = inlined_call_operand.vmem [shape: f32[2,8,32], index: 0, kind: input, shape index: {}]
  %s1 = inlined_call_operand.vmem [shape: f32[96,32], index: 1, kind: input, shape index: {}]
  %s2 = inlined_call_operand.hbm [shape: f32[2,1,32], index: 2, kind: output, shape index: {0}]
  %s3 = inlined_call_operand.hbm [shape: f32[2,1,32], index: 3, kind: output, shape index: {1}]
  %4 = xla_tuple %s2, %s3
  %s5 = sld [smem:[#allocation0]]
  $region49: #{tpu_custom_call.1} parent=0
    _
  %s7 = ssub.s32 1, %s5
  %s8 = scalar_select 0, %s7, %s5
  $region1: #{tpu_custom_call.1} parent=0
    #allocation2 [shape = 'u8[1024]{0}', space=vmem, size = 0x400, scoped, tag = 'output window, operand 0']
    #allocation3 [shape = 's32[2]{0}', space=sflag, size = 0x8, scoped, tag = 'scoped memory for tpu_custom_call.1']
    #allocation4 [shape = 'u8[1024]{0}', space=vmem, size = 0x400, scoped, tag = 'output window, operand 1']
    #allocation5 [shape = 's32[2]{0}', space=sflag, size = 0x8, scoped, tag = 'scoped memory for tpu_custom_call.1']
    %9 = vsyncpa [#allocation3], 0
    %s10 = scalar_lea.sflag [#allocation3], 1
    %11 = vsyncpa %s10, 0
    %12 = vsyncpa [#allocation5], 0
    %s13 = scalar_lea.sflag [#allocation5], 1
    %14 = vsyncpa %s13, 0
    loop: start=0, step=1, limit=4
    $region2: #{tpu_custom_call.1} parent=1 // loop_pre_header
      _
    $region3: #{tpu_custom_call.1} parent=1 // loop_header
      %s16 = sphi 0, %s20
      %p17 = scmp.ge.s32.totalorder %s16, 4
      %s26 = sphi 0, %s28
      %s29 = sphi 0, %s26
      %s30 = sphi 0, %s29
      %s46 = sphi 0, %s30
      %s50 = sphi 0, %s50
      %s52 = sphi 0, %s50
      %s53 = sphi 0, %s52
      %s67 = sphi 0, %s53
      %s73 = sphi 0, %s75
      %s76 = sphi 0, %s73
      %s77 = sphi 0, %s76
      %s93 = sphi 0, %s77
      %s99 = sphi 0, %s101
      %s102 = sphi 0, %s99
      %s103 = sphi 0, %s102
      %s119 = sphi 0, %s103
    $region4: #{tpu_custom_call.1} parent=1 // loop_header_branch
      %19 = sbr.rel (%p17) target = $region8
    $region5: #{tpu_custom_call.1} parent=1 // loop_body
      %s21 = ssub.s32 %s16, 1
      %s22 = ssub.s32 %s16, 2
      %s23 = sadd.s32 %s16, 1
      %s24 = ssub.s32 %s16, %s23
      %p25 = scmp.eq.s32.totalorder %s24, 0
      %s27 = sadd.s32 %s26, 1
      %s28 = scalar_select %p25, %s26, %s27
      %p31 = pneg %p25
      %p32 = scmp.eq.s32.totalorder %s16, 1
      %p33 = por %p31, %p32
      %p34 = scmp.ne.s32.totalorder %s26, %s29
      %p35 = scmp.eq.s32.totalorder %s16, 0
      %p36 = por %p34, %p35
      %p37 = scmp.ne.s32.totalorder %s26, %s29
      %p38 = scmp.eq.s32.totalorder %s21, 1
      %p39 = por %p37, %p38
      %p40 = scmp.ne.s32.totalorder %s29, %s30
      %p41 = scmp.eq.s32.totalorder %s21, 0
      %p42 = por %p40, %p41
      %p43 = scmp.ne.s32.totalorder %s29, %s30
      %p44 = scmp.eq.s32.totalorder %s22, 1
      %p45 = por %p43, %p44
      %p47 = scmp.ne.s32.totalorder %s30, %s46
      %p48 = scmp.eq.s32.totalorder %s22, 0
      %p49 = por %p47, %p48
      %s51 = sadd.s32 %s50, 1
      %p54 = scmp.eq.s32.totalorder %s16, 1
      %p55 = scmp.ne.s32.totalorder %s50, %s52
      %p56 = scmp.eq.s32.totalorder %s16, 0
      %p57 = por %p55, %p56
      %p58 = scmp.ne.s32.totalorder %s50, %s52
      %p59 = scmp.eq.s32.totalorder %s21, 1
      %p60 = por %p58, %p59
      %p61 = scmp.ne.s32.totalorder %s52, %s53
      %p62 = scmp.eq.s32.totalorder %s21, 0
      %p63 = por %p61, %p62
      %p64 = scmp.ne.s32.totalorder %s52, %s53
      %p65 = scmp.eq.s32.totalorder %s22, 1
      %p66 = por %p64, %p65
      %p68 = scmp.ne.s32.totalorder %s53, %s67
      %p69 = scmp.eq.s32.totalorder %s22, 0
      %p70 = por %p68, %p69
      %s71 = ssub.s32 %s16, %s23
      %p72 = scmp.eq.s32.totalorder %s71, 0
      %s74 = sadd.s32 %s73, 1
      %s75 = scalar_select %p72, %s73, %s74
      %p78 = pneg %p72
      %p79 = scmp.eq.s32.totalorder %s16, 1
      %p80 = por %p78, %p79
      %p81 = scmp.ne.s32.totalorder %s73, %s76
      %p82 = scmp.eq.s32.totalorder %s16, 0
      %p83 = por %p81, %p82
      %p84 = scmp.ne.s32.totalorder %s73, %s76
      %p85 = scmp.eq.s32.totalorder %s21, 1
      %p86 = por %p84, %p85
      %p87 = scmp.ne.s32.totalorder %s76, %s77
      %p88 = scmp.eq.s32.totalorder %s21, 0
      %p89 = por %p87, %p88
      %p90 = scmp.ne.s32.totalorder %s76, %s77
      %p91 = scmp.eq.s32.totalorder %s22, 1
      %p92 = por %p90, %p91
      %p94 = scmp.ne.s32.totalorder %s77, %s93
      %p95 = scmp.eq.s32.totalorder %s22, 0
      %p96 = por %p94, %p95
      %s97 = ssub.s32 %s16, %s23
      %p98 = scmp.eq.s32.totalorder %s97, 0
      %s100 = sadd.s32 %s99, 1
      %s101 = scalar_select %p98, %s99, %s100
      %p104 = pneg %p98
      %p105 = scmp.eq.s32.totalorder %s16, 1
      %p106 = por %p104, %p105
      %p107 = scmp.ne.s32.totalorder %s99, %s102
      %p108 = scmp.eq.s32.totalorder %s16, 0
      %p109 = por %p107, %p108
      %p110 = scmp.ne.s32.totalorder %s99, %s102
      %p111 = scmp.eq.s32.totalorder %s21, 1
      %p112 = por %p110, %p111
      %p113 = scmp.ne.s32.totalorder %s102, %s103
      %p114 = scmp.eq.s32.totalorder %s21, 0
      %p115 = por %p113, %p114
      %p116 = scmp.ne.s32.totalorder %s102, %s103
      %p117 = scmp.eq.s32.totalorder %s22, 1
      %p118 = por %p116, %p117
      %p120 = scmp.ne.s32.totalorder %s103, %s119
      %p121 = scmp.eq.s32.totalorder %s22, 0
      %p122 = por %p120, %p121
      %p123 = scmp.le.s32.totalorder 1, %s16
      %p124 = scmp.lt.s32.totalorder %s16, 3
      %p125 = pnand %p123, %p124
      %p126 = pneg %p125
      // Predicated region
      $region9: #{tpu_custom_call.1} parent=5 // pred_check
        _
      $region10: #{tpu_custom_call.1} parent=5 // pred_check_branch
        %128 = sbr.rel (%p125) target = $region12
      $region11: #{tpu_custom_call.1} parent=5 // pred_region
        %s129 = ssub.s32 %s16, 1
        // Predicated region
        $region13: #{tpu_custom_call.1} parent=11 // pred_check
          %p130 = pneg %p63
        $region14: #{tpu_custom_call.1} parent=11 // pred_check_branch
          %132 = sbr.rel (%p130) target = $region16
        $region15: #{tpu_custom_call.1} parent=11 // pred_region
          _
        $region16: #{tpu_custom_call.1} parent=11 // pred_fallthru
          _
      $region12: #{tpu_custom_call.1} parent=5 // pred_fallthru
        _
      %p133 = scmp.lt.s32.totalorder %s16, 2
      // Predicated region
      $region17: #{tpu_custom_call.1} parent=5 // pred_check
        %p134 = pneg %p133
      $region18: #{tpu_custom_call.1} parent=5 // pred_check_branch
        %136 = sbr.rel (%p134) target = $region20
      $region19: #{tpu_custom_call.1} parent=5 // pred_region
        // Predicated region
        $region21: #{tpu_custom_call.1} parent=19 // pred_check
          %p137 = pneg %p36
        $region22: #{tpu_custom_call.1} parent=19 // pred_check_branch
          %139 = sbr.rel (%p137) target = $region24
        $region23: #{tpu_custom_call.1} parent=19 // pred_region
          %p140 = scmp.lt.s32.totalorder %s16, 1
          %s141 = scalar_select %p140, %s16, 1
          %s142 = smul.addr %s141, 8
          %s143 = scalar_lea.vmem %s0, %s142
        $region24: #{tpu_custom_call.1} parent=19 // pred_fallthru
          _
      $region20: #{tpu_custom_call.1} parent=5 // pred_fallthru
        _
      %p144 = scmp.le.s32.totalorder 1, %s16
      %p145 = scmp.lt.s32.totalorder %s16, 3
      %p146 = pnand %p144, %p145
      %p147 = pneg %p146
      // Predicated region
      $region25: #{tpu_custom_call.1} parent=5 // pred_check
        _
      $region26: #{tpu_custom_call.1} parent=5 // pred_check_branch
        %149 = sbr.rel (%p146) target = $region28
      $region27: #{tpu_custom_call.1} parent=5 // pred_region
        %s150 = ssub.s32 %s16, 1
        %p151 = scmp.lt.s32.totalorder %s21, 1
        %s152 = scalar_select %p151, %s21, 1
        %s153 = smul.addr %s152, 8
        %s154 = scalar_lea.vmem %s0, %s153
        %p155 = pneg %p42
        %p156 = pneg %p39
        %p157 = pneg %p63
        %p158 = pneg %p60
        %p159 = pneg %p89
        %p160 = pneg %p86
        %s161 = sand.u32 %s76, 1
        %s162 = scalar_lea.sflag [#allocation3], %s161
        %s163 = sand.u32 %s76, 1
        %s164 = scalar_lea.vmem [#allocation2], %s163
        %p165 = pneg %p115
        %p166 = pneg %p112
        %s167 = sand.u32 %s102, 1
        %s168 = scalar_lea.sflag [#allocation5], %s167
        %s169 = sand.u32 %s102, 1
        %s170 = scalar_lea.vmem [#allocation4], %s169
        %p171 = scmp.lt.s32.totalorder %s21, 1
        %s172 = scalar_select %p171, %s21, 1
        %s173 = smul.addr %s172, 8
        %s174 = scalar_lea.vmem %s0, %s173
        %v175 = vld [vmem:[%s174] sm:$0xff]
        %v177 = vrot.slane %v175, 7
        %vm179 = vcmask 1040384
        %v180 = vsel %vm179, %v177, %v177
        %v181 = vrot.slane %v175, 1
        %vm183 = vcmask 1046528
        %v184 = vsel %vm183, %v181, %v181
        %185 = vrot.lane.b32.xlu0 %v175, 32
        %v186 = vpop.permute.xlu0 %185
        %189 = vrot.lane.b32.xlu0 %v184, 64
        %v190 = vpop.permute.xlu0 %189
        %vm192 = vcmask 261120
        %v193 = vsel %vm192, %v180, %v186
        %vm194 = vcmask 523264
        %v195 = vsel %vm194, %v193, %v190
        %v196 = vld [vmem:[%s1] sm:$0xff]
        %v197 = vld [vmem:[%s1 + $0x8] sm:$0xff]
        %v198 = vld [vmem:[%s1 + $0x10] sm:$0xff]
        %v199 = vld [vmem:[%s1 + $0x18] sm:$0xff]
        %v200 = vld [vmem:[%s1 + $0x20] sm:$0xff]
        %v201 = vld [vmem:[%s1 + $0x28] sm:$0xff]
        %v202 = vld [vmem:[%s1 + $0x30] sm:$0xff]
        %v203 = vld [vmem:[%s1 + $0x38] sm:$0xff]
        %v204 = vld [vmem:[%s1 + $0x40] sm:$0xff]
        %v205 = vld [vmem:[%s1 + $0x48] sm:$0xff]
        %v206 = vld [vmem:[%s1 + $0x50] sm:$0xff]
        %v207 = vld [vmem:[%s1 + $0x58] sm:$0xff]
        %vm208 = vcmask 785408
        %v210 = vsel %vm208, %v195, 0
        %212 = vmatpush.msra.mxu0 0.0
        %213 = vmatpush.msra.mxu0 0.0
        %214 = vmatpush.msra.mxu0 0.0
        %215 = vmatpush.msra.mxu0 0.0
        %216 = vmatpush.msra.mxu0 %v207
        %217 = vmatpush.msra.mxu0 %v206
        %218 = vmatpush.msra.mxu0 %v205
        %219 = vmatpush.msra.mxu0 %v204
        %220 = vmatpush.msra.mxu0 %v203
        %221 = vmatpush.msra.mxu0 %v202
        %222 = vmatpush.msra.mxu0 %v201
        %223 = vmatpush.msra.mxu0 %v200
        %224 = vmatpush.msra.mxu0 %v199
        %225 = vmatpush.msra.mxu0 %v198
        %226 = vmatpush.msra.mxu0 %v197
        %227 = vmatpush.msra.mxu0 %v196
        %228 = vmatmul.f32.gmra.mxu0 %v210
        %v229 = vpop.f32.mrf.mxu0
        %v230 = vadd.f32 0.0, %v229
        %231 = vdwg.mxu0
        %v232 = vsel %vm192, %v230, 0.0
        %v233 = vrot.slane %v232, 4
        %v234 = vadd.f32 %v232, %v233
        %v235 = vrot.slane %v234, 2
        %v236 = vadd.f32 %v234, %v235
        %v237 = vrot.slane %v236, 1
        %v238 = vadd.f32 %v236, %v237
        %vm239 = vcmask 253952
        %240 = vst.msk [vmem:[%s164] sm:$0x1] %vm239, %v238
        %v241 = vmul.f32 %v230, %v230
        %v242 = vsel %vm192, %v241, 0.0
        %v243 = vrot.slane %v242, 4
        %v244 = vadd.f32 %v242, %v243
        %v245 = vrot.slane %v244, 2
        %v246 = vadd.f32 %v244, %v245
        %v247 = vrot.slane %v246, 1
        %v248 = vadd.f32 %v246, %v247
        %249 = vst.msk [vmem:[%s170] sm:$0x1] %vm239, %v248
        %s250 = sand.u32 %s76, 1
        %s251 = scalar_lea.sflag [#allocation3], %s250
        %s252 = sand.u32 %s76, 1
        %s253 = scalar_lea.vmem [#allocation2], %s252
        %s254 = sand.u32 %s102, 1
        %s255 = scalar_lea.sflag [#allocation5], %s254
        %s256 = sand.u32 %s102, 1
        %s257 = scalar_lea.vmem [#allocation4], %s256
        // Predicated region
        $region29: #{tpu_custom_call.1} parent=27 // pred_check
          %p258 = pneg %p86
        $region30: #{tpu_custom_call.1} parent=27 // pred_check_branch
          %260 = sbr.rel (%p258) target = $region32
        $region31: #{tpu_custom_call.1} parent=27 // pred_region
          %262 = vsyncadd %s251, 0
          %s263 = scalar_lea.hbm %s2, %s21
          %s265 = sshll.u32 %s253, 4
          %s266 = int_to_ptr.vmem [resolvable:$true] %s265
          %s267 = sshll.u32 %s263, 4
          %s268 = int_to_ptr.hbm [resolvable:$true] %s267
          %270 = dma.vmem_to_hbm [thread:$0]  %s266, 16, %s268, %s251
        $region32: #{tpu_custom_call.1} parent=27 // pred_fallthru
          _
        // Predicated region
        $region33: #{tpu_custom_call.1} parent=27 // pred_check
          %p271 = pneg %p112
        $region34: #{tpu_custom_call.1} parent=27 // pred_check_branch
          %273 = sbr.rel (%p271) target = $region36
        $region35: #{tpu_custom_call.1} parent=27 // pred_region
          %275 = vsyncadd %s255, 0
          %s276 = scalar_lea.hbm %s3, %s21
          %s278 = sshll.u32 %s257, 4
          %s279 = int_to_ptr.vmem [resolvable:$true] %s278
          %s280 = sshll.u32 %s276, 4
          %s281 = int_to_ptr.hbm [resolvable:$true] %s280
          %283 = dma.vmem_to_hbm [thread:$0]  %s279, 16, %s281, %s255
        $region36: #{tpu_custom_call.1} parent=27 // pred_fallthru
          _
      $region28: #{tpu_custom_call.1} parent=5 // pred_fallthru
        _
      %p284 = scmp.le.s32.totalorder 2, %s16
      // Predicated region
      $region37: #{tpu_custom_call.1} parent=5 // pred_check
        %p285 = pneg %p284
      $region38: #{tpu_custom_call.1} parent=5 // pred_check_branch
        %287 = sbr.rel (%p285) target = $region40
      $region39: #{tpu_custom_call.1} parent=5 // pred_region
        %s288 = ssub.s32 %s16, 2
        // Predicated region
        $region41: #{tpu_custom_call.1} parent=39 // pred_check
          %p289 = pneg %p92
        $region42: #{tpu_custom_call.1} parent=39 // pred_check_branch
          %291 = sbr.rel (%p289) target = $region44
        $region43: #{tpu_custom_call.1} parent=39 // pred_region
          %s292 = sand.u32 %s77, 1
          %s293 = scalar_lea.sflag [#allocation3], %s292
          %s294 = sand.u32 %s77, 1
          %s295 = scalar_lea.vmem [#allocation2], %s294
          %297 = dma.done %s293, 16
        $region44: #{tpu_custom_call.1} parent=39 // pred_fallthru
          _
        // Predicated region
        $region45: #{tpu_custom_call.1} parent=39 // pred_check
          %p298 = pneg %p118
        $region46: #{tpu_custom_call.1} parent=39 // pred_check_branch
          %300 = sbr.rel (%p298) target = $region48
        $region47: #{tpu_custom_call.1} parent=39 // pred_region
          %s301 = sand.u32 %s103, 1
          %s302 = scalar_lea.sflag [#allocation5], %s301
          %s303 = sand.u32 %s103, 1
          %s304 = scalar_lea.vmem [#allocation4], %s303
          %306 = dma.done %s302, 16
        $region48: #{tpu_custom_call.1} parent=39 // pred_fallthru
          _
      $region40: #{tpu_custom_call.1} parent=5 // pred_fallthru
        _
    $region6: #{tpu_custom_call.1} parent=1 // loop_footer
      %s20 = sadd.s32 1, %s16
    $region7: #{tpu_custom_call.1} parent=1 // loop_footer_branch
      %15 = sbr.rel target = $region3
    $region8: #{tpu_custom_call.1} parent=1 // loop_exit
      _
    %307 = vsyncpa [#allocation3], 1
    %s308 = scalar_lea.sflag [#allocation3], 1
    %309 = vsyncpa %s308, 1
    %310 = vsyncpa [#allocation5], 1
    %s311 = scalar_lea.sflag [#allocation5], 1
    %312 = vsyncpa %s311, 1

</llo_original>
